<compile_context>
chip_gen: v5e
topology: v5e:2x2
jax: 0.10.0
libtpu: 0.0.40
codegen_flags: <defaults>
</compile_context>

<pallas_src>
import functools

import jax
import jax.numpy as jnp
from jax import lax
from jax.experimental import pallas as pl
from jax.experimental.pallas import tpu as pltpu


def _round_up(x, m):
    return -(-x // m) * m


def _vmem_budget_bytes():
    """~75% of per-core VMEM (queried at trace time; conservative fallback)."""
    try:
        cap = int(pltpu.get_tpu_info().vmem_capacity_bytes)
    except Exception:
        cap = 0
    if cap <= 0:
        cap = 64 << 20            # v7x per-TensorCore VMEM (smallest current gen)
    cap = min(cap, 128 << 20)     # per-core physical ceiling on v5e/v6e
    return max(min(cap * 3 // 4, 100 << 20), 32 << 20)


def _decoder_kernel(x_ref, w_ref, b_ref, mask_ref, o_ref, rhs_ref,
                    *, k, W, pad_lo, M):
    """One (batch, row-tile) step.

    x_ref:    (Cin, M_halo)       flat, halo-padded input slab
    w_ref:    (Cout, k*k*Cin)     raw weights, K ordered (kh, kw, ci)
    b_ref:    (Cout, 1)           bias
    mask_ref: (k, M) f32          0/1 width-validity mask per kw tap
    o_ref:    (Cout, M)           flattened-NCHW output slab
    rhs_ref:  (k*k*Cin, M) f32    im2col scratch
    """
    cin = x_ref.shape[0]

    # Gather the k*k shifted windows into the im2col matrix.  All slices are
    # static; the 'same' width padding is a 0/1 lane-mask multiply.
    for kh in range(k):
        for kw in range(k):
            win = x_ref[:, pl.ds(kh * W + kw, M)].astype(jnp.float32)
            if kw != pad_lo:                       # center tap needs no mask
                win = win * mask_ref[pl.ds(kw, 1), :]
            rhs_ref[pl.ds((kh * k + kw) * cin, cin), :] = win

    # Non-negativity constraint applied once per step (not per tap).
    w_nn = jnp.maximum(w_ref[...].astype(jnp.float32), 0.0)

    # Single fused MXU matmul over the whole K = k*k*Cin contraction.
    acc = jnp.dot(w_nn, rhs_ref[...], preferred_element_type=jnp.float32)
    acc = acc + b_ref[...].astype(jnp.float32)      # (Cout, 1) lane-broadcast
    o_ref[...] = jnp.maximum(acc, 0.0).astype(o_ref.dtype)


def decoder_forward(x_nchw, weight_raw, bias):
    """Pallas forward for Decoder: relu(conv2d(x, relu(W_raw), b, 1, 'same'))."""
    B, Cin, H, W = x_nchw.shape
    Cout, Cin_w, k, k2 = weight_raw.shape
    assert Cin == Cin_w and k == k2

    pad = k - 1
    pad_lo = pad // 2                       # PyTorch 'same': extra pad on the right
    KK = k * k * Cin
    halo = pad * (W + 1)                    # flat-axis halo of the conv window

    in_its = jnp.dtype(x_nchw.dtype).itemsize
    budget = _vmem_budget_bytes()

    cin_t = _round_up(Cin, 8)
    kk_t = _round_up(KK, 8)
    cout_t = _round_up(Cout, 8)

    def tiled_bytes(th):
        """Per-step VMEM in (8,128)-tiled bytes (double-buffered I/O)."""
        m = th * W
        mh = m + halo
        x_b = 2 * cin_t * _round_up(mh, 128) * in_its      # input slab (x2 buf)
        o_b = 2 * cout_t * _round_up(m, 128) * in_its      # output slab (x2 buf)
        r_b = kk_t * _round_up(m, 128) * 4                 # im2col scratch
        a_b = cout_t * _round_up(m, 128) * 4               # matmul result temp
        w_b = 2 * cout_t * _round_up(KK, 128) * in_its     # weights
        m_b = 2 * _round_up(k, 8) * _round_up(m, 128) * 4  # width masks
        b_b = 2 * cout_t * 128 * in_its                    # bias
        return x_b + o_b + r_b + a_b + w_b + m_b + b_b

    # Rows per output tile: must fit the VMEM budget; prefer lane-dense stores
    # (tH*W % 128 == 0), a big enough M (>= 512) to amortise per-step overhead
    # and the resident-RHS push, and at least 2 row tiles for pipelining.
    divisors = [t for t in range(1, H + 1) if H % t == 0]
    feasible = [t for t in divisors if tiled_bytes(t) <= budget] or [1]
    tH = max(feasible, key=lambda t: ((t * W) % 128 == 0, t * W >= 512,
                                      H // t >= 2, t * W))
    M = tH * W
    M_halo = M + halo
    n_tiles = H // tH

    # Flatten spatial dims (free reshape), halo-pad the flat axis, and carve the
    # per-row-tile slabs (overlapping by the halo).  The input is Cout/Cin times
    # smaller than the output, so this small pass replaces the previous full
    # NCHW<->NHWC transposes of the activations.
    L = pad_lo * (W + 1)
    R = halo - L
    x_flat = x_nchw.reshape(B, Cin, H * W)
    x_padded = jnp.pad(x_flat, ((0, 0), (0, 0), (L, R)))
    slabs = jnp.stack(
        [x_padded[:, :, i * M:i * M + M_halo] for i in range(n_tiles)], axis=1
    )                                                   # (B, n_tiles, Cin, M_halo)

    # Weights reordered so K = (kh, kw, ci) matches the im2col row order (tiny).
    w_mat = jnp.transpose(weight_raw, (0, 2, 3, 1)).reshape(Cout, KK)
    b_col = bias.reshape(Cout, 1)

    # 0/1 width-validity masks per kw tap (M is a multiple of W, so the pattern
    # is identical for every row tile).  Computed host-side: no in-kernel mod.
    col = jnp.arange(M, dtype=jnp.int32) % W
    masks = jnp.stack(
        [jnp.logical_and(col + (kw - pad_lo) >= 0,
                         col + (kw - pad_lo) < W).astype(jnp.float32)
         for kw in range(k)], axis=0)                    # (k, M)

    est = tiled_bytes(tH)
    vmem_limit = int(min(budget, max(2 * est, 32 << 20)))

    kernel = functools.partial(_decoder_kernel, k=k, W=W, pad_lo=pad_lo, M=M)

    out_flat = pl.pallas_call(
        kernel,
        out_shape=jax.ShapeDtypeStruct((B, Cout, H * W), x_nchw.dtype),
        grid_spec=pltpu.PrefetchScalarGridSpec(
            num_scalar_prefetch=0,
            grid=(B, n_tiles),
            in_specs=[
                pl.BlockSpec((None, None, Cin, M_halo), lambda b, r: (b, r, 0, 0)),
                pl.BlockSpec((Cout, KK), lambda b, r: (0, 0)),
                pl.BlockSpec((Cout, 1), lambda b, r: (0, 0)),
                pl.BlockSpec((k, M), lambda b, r: (0, 0)),
            ],
            out_specs=pl.BlockSpec((None, Cout, M), lambda b, r: (b, 0, r)),
            scratch_shapes=[pltpu.VMEM((KK, M), jnp.float32)],
        ),
        compiler_params=pltpu.CompilerParams(
            dimension_semantics=("parallel", "parallel"),
            vmem_limit_bytes=vmem_limit,
        ),
        cost_estimate=pl.CostEstimate(
            flops=2 * B * H * W * KK * Cout,
            transcendentals=0,
            bytes_accessed=(B * n_tiles * Cin * M_halo * in_its
                            + Cout * KK * in_its + Cout * in_its
                            + k * M * 4
                            + B * Cout * H * W * in_its),
        ),
    )(slabs, w_mat, b_col, masks)

    # Contiguous reshape back to NCHW (metadata only, no HBM pass).
    return out_flat.reshape(B, Cout, H, W)


def _reference(x_nchw, weight_raw, bias, k):
    pad = k - 1
    pad_lo = pad // 2
    pad_hi = pad - pad_lo
    w = jax.nn.relu(weight_raw)
    y = lax.conv_general_dilated(
        x_nchw, w, window_strides=(1, 1),
        padding=[(pad_lo, pad_hi), (pad_lo, pad_hi)],
        dimension_numbers=("NCHW", "OIHW", "NCHW"))
    y = y + bias[None, :, None, None]
    return jax.nn.relu(y)


if __name__ == "__main__":
    # params = {'num_endmembers': 4, 'd_filters': 128, 'd_size': 3}
    batch, num_endmembers, d_filters, d_size = 2, 4, 128, 3
    H = W = 16

    key = jax.random.PRNGKey(0)
    kx, kw_, kb = jax.random.split(key, 3)
    x = jax.random.normal(kx, (batch, num_endmembers, H, W), dtype=jnp.float32)
    weight_raw = 0.03 * jax.random.normal(
        kw_, (d_filters, num_endmembers, d_size, d_size), dtype=jnp.float32)
    bias = 0.03 * jax.random.normal(kb, (d_filters,), dtype=jnp.float32)

    out = decoder_forward(x, weight_raw, bias)
    out = jax.block_until_ready(out)

    ref = _reference(x, weight_raw, bias, d_size)
    assert out.shape == (batch, d_filters, H, W)
    # Tolerance accounts for MXU default-precision rounding differences vs XLA conv.
    assert jnp.allclose(out, ref, atol=2e-3, rtol=2e-2)
    assert bool(jnp.all(out >= 0.0))

    print("KERNEL_OK")
</pallas_src>

<mosaic_0001>
module attributes {stable_mosaic.version = 11 : i64} {
  func.func @_decoder_kernel(%arg0: i32, %arg1: i32, %arg2: memref<1x1x4x162xf32, #tpu.memory_space<vmem>>, %arg3: memref<128x36xf32, #tpu.memory_space<vmem>>, %arg4: memref<128x1xf32, #tpu.memory_space<vmem>>, %arg5: memref<3x128xf32, #tpu.memory_space<vmem>>, %arg6: memref<1x128x128xf32, #tpu.memory_space<vmem>>, %arg7: memref<36x128xf32, #tpu.memory_space<vmem>>) attributes {dimension_semantics = [#tpu.dimension_semantics<parallel>, #tpu.dimension_semantics<parallel>], iteration_bounds = array<i64: 2, 2>, scalar_prefetch = 0 : i64, scratch_operands = 1 : i64, tpu.core_type = #tpu.core_type<tc>, window_params = [{transform_indices = @transform_0, window_bounds = array<i64: 1, 1, 4, 162>}, {pipeline_mode = #tpu.pipeline_mode<synchronous>, transform_indices = @transform_1, window_bounds = array<i64: 128, 36>}, {pipeline_mode = #tpu.pipeline_mode<synchronous>, transform_indices = @transform_2, window_bounds = array<i64: 128, 1>}, {pipeline_mode = #tpu.pipeline_mode<synchronous>, transform_indices = @transform_3, window_bounds = array<i64: 3, 128>}, {transform_indices = @transform_4, window_bounds = array<i64: 1, 128, 128>}]} {
    %c0 = arith.constant 0 : index
    %c0_0 = arith.constant 0 : index
    %c0_1 = arith.constant 0 : index
    %c0_2 = arith.constant 0 : index
    %0 = vector.load %arg2[%c0, %c0_0, %c0_1, %c0_2] : memref<1x1x4x162xf32, #tpu.memory_space<vmem>>, vector<1x1x4x128xf32>
    %1 = vector.shape_cast %0 : vector<1x1x4x128xf32> to vector<4x128xf32>
    %c0_3 = arith.constant 0 : index
    %c0_4 = arith.constant 0 : index
    %2 = vector.load %arg5[%c0_3, %c0_4] : memref<3x128xf32, #tpu.memory_space<vmem>>, vector<1x128xf32>
    %3 = vector.broadcast %2 : vector<1x128xf32> to vector<4x128xf32>
    %4 = arith.mulf %1, %3 : vector<4x128xf32>
    %c0_5 = arith.constant 0 : index
    %c0_6 = arith.constant 0 : index
    %5 = vector.load %arg7[%c0_5, %c0_6] : memref<36x128xf32, #tpu.memory_space<vmem>>, vector<4x128xf32>
    tpu.vector_store %arg7[%c0_5, %c0_6], %4 {strides = array<i32>} : memref<36x128xf32, #tpu.memory_space<vmem>>, vector<4x128xf32>,
    %c0_7 = arith.constant 0 : index
    %c0_8 = arith.constant 0 : index
    %c0_9 = arith.constant 0 : index
    %c1 = arith.constant 1 : index
    %6 = vector.load %arg2[%c0_7, %c0_8, %c0_9, %c1] : memref<1x1x4x162xf32, #tpu.memory_space<vmem>>, vector<1x1x4x128xf32>
    %7 = vector.shape_cast %6 : vector<1x1x4x128xf32> to vector<4x128xf32>
    %c4 = arith.constant 4 : index
    %c0_10 = arith.constant 0 : index
    %8 = vector.load %arg7[%c4, %c0_10] : memref<36x128xf32, #tpu.memory_space<vmem>>, vector<4x128xf32>
    tpu.vector_store %arg7[%c4, %c0_10], %7 {strides = array<i32>} : memref<36x128xf32, #tpu.memory_space<vmem>>, vector<4x128xf32>,
    %c0_11 = arith.constant 0 : index
    %c0_12 = arith.constant 0 : index
    %c0_13 = arith.constant 0 : index
    %c2 = arith.constant 2 : index
    %9 = vector.load %arg2[%c0_11, %c0_12, %c0_13, %c2] : memref<1x1x4x162xf32, #tpu.memory_space<vmem>>, vector<1x1x4x128xf32>
    %10 = vector.shape_cast %9 : vector<1x1x4x128xf32> to vector<4x128xf32>
    %c2_14 = arith.constant 2 : index
    %c0_15 = arith.constant 0 : index
    %11 = vector.load %arg5[%c2_14, %c0_15] : memref<3x128xf32, #tpu.memory_space<vmem>>, vector<1x128xf32>
    %12 = vector.broadcast %11 : vector<1x128xf32> to vector<4x128xf32>
    %13 = arith.mulf %10, %12 : vector<4x128xf32>
    %c8 = arith.constant 8 : index
    %c0_16 = arith.constant 0 : index
    %14 = vector.load %arg7[%c8, %c0_16] : memref<36x128xf32, #tpu.memory_space<vmem>>, vector<4x128xf32>
    tpu.vector_store %arg7[%c8, %c0_16], %13 {strides = array<i32>} : memref<36x128xf32, #tpu.memory_space<vmem>>, vector<4x128xf32>,
    %c0_17 = arith.constant 0 : index
    %c0_18 = arith.constant 0 : index
    %c0_19 = arith.constant 0 : index
    %c16 = arith.constant 16 : index
    %15 = vector.load %arg2[%c0_17, %c0_18, %c0_19, %c16] : memref<1x1x4x162xf32, #tpu.memory_space<vmem>>, vector<1x1x4x128xf32>
    %16 = vector.shape_cast %15 : vector<1x1x4x128xf32> to vector<4x128xf32>
    %c0_20 = arith.constant 0 : index
    %c0_21 = arith.constant 0 : index
    %17 = vector.load %arg5[%c0_20, %c0_21] : memref<3x128xf32, #tpu.memory_space<vmem>>, vector<1x128xf32>
    %18 = vector.broadcast %17 : vector<1x128xf32> to vector<4x128xf32>
    %19 = arith.mulf %16, %18 : vector<4x128xf32>
    %c12 = arith.constant 12 : index
    %c0_22 = arith.constant 0 : index
    %20 = vector.load %arg7[%c12, %c0_22] : memref<36x128xf32, #tpu.memory_space<vmem>>, vector<4x128xf32>
    tpu.vector_store %arg7[%c12, %c0_22], %19 {strides = array<i32>} : memref<36x128xf32, #tpu.memory_space<vmem>>, vector<4x128xf32>,
    %c0_23 = arith.constant 0 : index
    %c0_24 = arith.constant 0 : index
    %c0_25 = arith.constant 0 : index
    %c17 = arith.constant 17 : index
    %21 = vector.load %arg2[%c0_23, %c0_24, %c0_25, %c17] : memref<1x1x4x162xf32, #tpu.memory_space<vmem>>, vector<1x1x4x128xf32>
    %22 = vector.shape_cast %21 : vector<1x1x4x128xf32> to vector<4x128xf32>
    %c16_26 = arith.constant 16 : index
    %c0_27 = arith.constant 0 : index
    %23 = vector.load %arg7[%c16_26, %c0_27] : memref<36x128xf32, #tpu.memory_space<vmem>>, vector<4x128xf32>
    tpu.vector_store %arg7[%c16_26, %c0_27], %22 {strides = array<i32>} : memref<36x128xf32, #tpu.memory_space<vmem>>, vector<4x128xf32>,
    %c0_28 = arith.constant 0 : index
    %c0_29 = arith.constant 0 : index
    %c0_30 = arith.constant 0 : index
    %c18 = arith.constant 18 : index
    %24 = vector.load %arg2[%c0_28, %c0_29, %c0_30, %c18] : memref<1x1x4x162xf32, #tpu.memory_space<vmem>>, vector<1x1x4x128xf32>
    %25 = vector.shape_cast %24 : vector<1x1x4x128xf32> to vector<4x128xf32>
    %c2_31 = arith.constant 2 : index
    %c0_32 = arith.constant 0 : index
    %26 = vector.load %arg5[%c2_31, %c0_32] : memref<3x128xf32, #tpu.memory_space<vmem>>, vector<1x128xf32>
    %27 = vector.broadcast %26 : vector<1x128xf32> to vector<4x128xf32>
    %28 = arith.mulf %25, %27 : vector<4x128xf32>
    %c20 = arith.constant 20 : index
    %c0_33 = arith.constant 0 : index
    %29 = vector.load %arg7[%c20, %c0_33] : memref<36x128xf32, #tpu.memory_space<vmem>>, vector<4x128xf32>
    tpu.vector_store %arg7[%c20, %c0_33], %28 {strides = array<i32>} : memref<36x128xf32, #tpu.memory_space<vmem>>, vector<4x128xf32>,
    %c0_34 = arith.constant 0 : index
    %c0_35 = arith.constant 0 : index
    %c0_36 = arith.constant 0 : index
    %c32 = arith.constant 32 : index
    %30 = vector.load %arg2[%c0_34, %c0_35, %c0_36, %c32] : memref<1x1x4x162xf32, #tpu.memory_space<vmem>>, vector<1x1x4x128xf32>
    %31 = vector.shape_cast %30 : vector<1x1x4x128xf32> to vector<4x128xf32>
    %c0_37 = arith.constant 0 : index
    %c0_38 = arith.constant 0 : index
    %32 = vector.load %arg5[%c0_37, %c0_38] : memref<3x128xf32, #tpu.memory_space<vmem>>, vector<1x128xf32>
    %33 = vector.broadcast %32 : vector<1x128xf32> to vector<4x128xf32>
    %34 = arith.mulf %31, %33 : vector<4x128xf32>
    %c24 = arith.constant 24 : index
    %c0_39 = arith.constant 0 : index
    %35 = vector.load %arg7[%c24, %c0_39] : memref<36x128xf32, #tpu.memory_space<vmem>>, vector<4x128xf32>
    tpu.vector_store %arg7[%c24, %c0_39], %34 {strides = array<i32>} : memref<36x128xf32, #tpu.memory_space<vmem>>, vector<4x128xf32>,
    %c0_40 = arith.constant 0 : index
    %c0_41 = arith.constant 0 : index
    %c0_42 = arith.constant 0 : index
    %c33 = arith.constant 33 : index
    %36 = vector.load %arg2[%c0_40, %c0_41, %c0_42, %c33] : memref<1x1x4x162xf32, #tpu.memory_space<vmem>>, vector<1x1x4x128xf32>
    %37 = vector.shape_cast %36 : vector<1x1x4x128xf32> to vector<4x128xf32>
    %c28 = arith.constant 28 : index
    %c0_43 = arith.constant 0 : index
    %38 = vector.load %arg7[%c28, %c0_43] : memref<36x128xf32, #tpu.memory_space<vmem>>, vector<4x128xf32>
    tpu.vector_store %arg7[%c28, %c0_43], %37 {strides = array<i32>} : memref<36x128xf32, #tpu.memory_space<vmem>>, vector<4x128xf32>,
    %c0_44 = arith.constant 0 : index
    %c0_45 = arith.constant 0 : index
    %c0_46 = arith.constant 0 : index
    %c34 = arith.constant 34 : index
    %39 = vector.load %arg2[%c0_44, %c0_45, %c0_46, %c34] : memref<1x1x4x162xf32, #tpu.memory_space<vmem>>, vector<1x1x4x128xf32>
    %40 = vector.shape_cast %39 : vector<1x1x4x128xf32> to vector<4x128xf32>
    %c2_47 = arith.constant 2 : index
    %c0_48 = arith.constant 0 : index
    %41 = vector.load %arg5[%c2_47, %c0_48] : memref<3x128xf32, #tpu.memory_space<vmem>>, vector<1x128xf32>
    %42 = vector.broadcast %41 : vector<1x128xf32> to vector<4x128xf32>
    %43 = arith.mulf %40, %42 : vector<4x128xf32>
    %c32_49 = arith.constant 32 : index
    %c0_50 = arith.constant 0 : index
    %44 = vector.load %arg7[%c32_49, %c0_50] : memref<36x128xf32, #tpu.memory_space<vmem>>, vector<4x128xf32>
    tpu.vector_store %arg7[%c32_49, %c0_50], %43 {strides = array<i32>} : memref<36x128xf32, #tpu.memory_space<vmem>>, vector<4x128xf32>,
    %c0_51 = arith.constant 0 : index
    %c0_52 = arith.constant 0 : index
    %45 = vector.load %arg3[%c0_51, %c0_52] : memref<128x36xf32, #tpu.memory_space<vmem>>, vector<128x36xf32>
    %cst = arith.constant 0.000000e+00 : f32
    %46 = vector.broadcast %cst : f32 to vector<128x36xf32>
    %47 = arith.maximumf %45, %46 : vector<128x36xf32>
    %c0_53 = arith.constant 0 : index
    %c0_54 = arith.constant 0 : index
    %48 = vector.load %arg7[%c0_53, %c0_54] : memref<36x128xf32, #tpu.memory_space<vmem>>, vector<36x128xf32>
    %cst_55 = arith.constant dense<0.000000e+00> : vector<128x128xf32>
    %49 = tpu.matmul %47, %48, %cst_55 {dimension_numbers = #tpu.dot_dimension_numbers<[1], [0], [0], [1], [0, 0, 1, 1], [], []>} : vector<128x36xf32>, vector<36x128xf32>, vector<128x128xf32> -> vector<128x128xf32>
    %c0_56 = arith.constant 0 : index
    %c0_57 = arith.constant 0 : index
    %50 = vector.load %arg4[%c0_56, %c0_57] : memref<128x1xf32, #tpu.memory_space<vmem>>, vector<128x1xf32>
    %51 = vector.broadcast %50 : vector<128x1xf32> to vector<128x128xf32>
    %52 = arith.addf %49, %51 : vector<128x128xf32>
    %cst_58 = arith.constant 0.000000e+00 : f32
    %53 = vector.broadcast %cst_58 : f32 to vector<128x128xf32>
    %54 = arith.maximumf %52, %53 : vector<128x128xf32>
    %c0_59 = arith.constant 0 : index
    %c0_60 = arith.constant 0 : index
    %c0_61 = arith.constant 0 : index
    %55 = vector.load %arg6[%c0_59, %c0_60, %c0_61] : memref<1x128x128xf32, #tpu.memory_space<vmem>>, vector<1x128x128xf32>
    %56 = vector.shape_cast %55 : vector<1x128x128xf32> to vector<128x128xf32>
    %57 = vector.shape_cast %54 : vector<128x128xf32> to vector<1x128x128xf32>
    tpu.vector_store %arg6[%c0_59, %c0_60, %c0_61], %57 {strides = array<i32>} : memref<1x128x128xf32, #tpu.memory_space<vmem>>, vector<1x128x128xf32>,
    return
  }
  func.func @transform_0(%arg0: i32, %arg1: i32) -> (i32, i32, i32, i32) {
    %c0_i32 = arith.constant 0 : i32
    %c0_i32_0 = arith.constant 0 : i32
    %c0_i32_1 = arith.constant 0 : i32
    return %arg0, %arg1, %c0_i32, %c0_i32_0 : i32, i32, i32, i32
  }
  func.func @transform_1(%arg0: i32, %arg1: i32) -> (i32, i32) {
    %c0_i32 = arith.constant 0 : i32
    %c0_i32_0 = arith.constant 0 : i32
    %c0_i32_1 = arith.constant 0 : i32
    return %c0_i32, %c0_i32_0 : i32, i32
  }
  func.func @transform_2(%arg0: i32, %arg1: i32) -> (i32, i32) {
    %c0_i32 = arith.constant 0 : i32
    %c0_i32_0 = arith.constant 0 : i32
    %c0_i32_1 = arith.constant 0 : i32
    return %c0_i32, %c0_i32_0 : i32, i32
  }
  func.func @transform_3(%arg0: i32, %arg1: i32) -> (i32, i32) {
    %c0_i32 = arith.constant 0 : i32
    %c0_i32_0 = arith.constant 0 : i32
    %c0_i32_1 = arith.constant 0 : i32
    return %c0_i32, %c0_i32_0 : i32, i32
  }
  func.func @transform_4(%arg0: i32, %arg1: i32) -> (i32, i32, i32) {
    %c0_i32 = arith.constant 0 : i32
    %c0_i32_0 = arith.constant 0 : i32
    return %arg0, %c0_i32, %arg1 : i32, i32, i32
  }
}

</mosaic_0001>

<llo_original>
// kernel: tpu_custom_call.1
$region0: #{tpu_custom_call.1}
  #allocation0 [shape = 'u32[]', space=smem, size = 0x4, offset = 0x4, fixed_abs, tag = 'smem constant byte address 0x4 - core index']
  #allocation1 [shape = 'u32[72,128]{1,0:T(1,128)}', space=vmem, size = 0x9000, scoped, tag = 'internal scratch']
  #allocation2 [shape = 'f32[36,128]{1,0:T(8,128)}', space=vmem, size = 0x5000, scoped, tag = 'scratch operand']
  %s0 = inlined_call_operand.vmem [shape: f32[2,2,4,162], index: 0, kind: input, shape index: {}]
  %s1 = inlined_call_operand.vmem [shape: f32[128,36], index: 1, kind: input, shape index: {}]
  %s2 = inlined_call_operand.vmem [shape: f32[128,1], index: 2, kind: input, shape index: {}]
  %s3 = inlined_call_operand.vmem [shape: f32[3,128], index: 3, kind: input, shape index: {}]
  %s4 = inlined_call_operand.hbm [shape: f32[2,128,256], index: 4, kind: output, shape index: {}]
  %s5 = sld [smem:[#allocation0]]
  $region49: #{tpu_custom_call.1} parent=0
    _
  %s7 = ssub.s32 1, %s5
  %s8 = scalar_select 0, %s7, %s5
  $region1: #{tpu_custom_call.1} parent=0
    #allocation3 [shape = 'u8[131072]{0}', space=vmem, size = 0x20000, scoped, tag = 'output window, operand 0']
    #allocation4 [shape = 's32[2]{0}', space=sflag, size = 0x8, scoped, tag = 'scoped memory for tpu_custom_call.1']
    %9 = vsyncpa [#allocation4], 0
    %s10 = scalar_lea.sflag [#allocation4], 1
    %11 = vsyncpa %s10, 0
    loop: start=0, step=1, limit=6
    $region2: #{tpu_custom_call.1} parent=1 // loop_pre_header
      _
    $region3: #{tpu_custom_call.1} parent=1 // loop_header
      %s13 = sphi 0, %s17
      %p14 = scmp.ge.s32.totalorder %s13, 6
      %s20 = sphi 0, %s32
      %s21 = sphi 0, %s28
      %s22 = sphi 0, %s20
      %s23 = sphi 0, %s21
      %s24 = sphi 0, %s22
      %s25 = sphi 0, %s23
      %s37 = sphi 0, %s39
      %s40 = sphi 0, %s37
      %s41 = sphi 0, %s40
      %s57 = sphi 0, %s41
      %s61 = sphi 0, %s61
      %s63 = sphi 0, %s61
      %s64 = sphi 0, %s63
      %s78 = sphi 0, %s64
      %s82 = sphi 0, %s82
      %s84 = sphi 0, %s82
      %s85 = sphi 0, %s84
      %s99 = sphi 0, %s85
      %s103 = sphi 0, %s103
      %s105 = sphi 0, %s103
      %s106 = sphi 0, %s105
      %s120 = sphi 0, %s106
      %s128 = sphi 0, %s130
      %s131 = sphi 0, %s128
      %s132 = sphi 0, %s131
      %s148 = sphi 0, %s132
    $region4: #{tpu_custom_call.1} parent=1 // loop_header_branch
      %16 = sbr.rel (%p14) target = $region8
    $region5: #{tpu_custom_call.1} parent=1 // loop_body
      %s18 = ssub.s32 %s13, 1
      %s19 = ssub.s32 %s13, 2
      %s26 = sadd.s32 1, %s21
      %p27 = scmp.ge.s32.totalorder %s26, 2
      %s28 = scalar_select %p27, 0, %s26
      %s29 = sadd.s32 1, %s20
      %s30 = scalar_select %p27, %s29, %s20
      %p31 = scmp.ge.s32.totalorder %s30, 2
      %s32 = scalar_select %p31, 0, %s30
      %s33 = ssub.s32 %s20, %s32
      %s34 = ssub.s32 %s21, %s28
      %s35 = sor.u32 %s33, %s34
      %p36 = scmp.eq.s32.totalorder %s35, 0
      %s38 = sadd.s32 %s37, 1
      %s39 = scalar_select %p36, %s37, %s38
      %p42 = pneg %p36
      %p43 = scmp.eq.s32.totalorder %s13, 3
      %p44 = por %p42, %p43
      %p45 = scmp.ne.s32.totalorder %s37, %s40
      %p46 = scmp.eq.s32.totalorder %s13, 0
      %p47 = por %p45, %p46
      %p48 = scmp.ne.s32.totalorder %s37, %s40
      %p49 = scmp.eq.s32.totalorder %s18, 3
      %p50 = por %p48, %p49
      %p51 = scmp.ne.s32.totalorder %s40, %s41
      %p52 = scmp.eq.s32.totalorder %s18, 0
      %p53 = por %p51, %p52
      %p54 = scmp.ne.s32.totalorder %s40, %s41
      %p55 = scmp.eq.s32.totalorder %s19, 3
      %p56 = por %p54, %p55
      %p58 = scmp.ne.s32.totalorder %s41, %s57
      %p59 = scmp.eq.s32.totalorder %s19, 0
      %p60 = por %p58, %p59
      %s62 = sadd.s32 %s61, 1
      %p65 = scmp.eq.s32.totalorder %s13, 3
      %p66 = scmp.ne.s32.totalorder %s61, %s63
      %p67 = scmp.eq.s32.totalorder %s13, 0
      %p68 = por %p66, %p67
      %p69 = scmp.ne.s32.totalorder %s61, %s63
      %p70 = scmp.eq.s32.totalorder %s18, 3
      %p71 = por %p69, %p70
      %p72 = scmp.ne.s32.totalorder %s63, %s64
      %p73 = scmp.eq.s32.totalorder %s18, 0
      %p74 = por %p72, %p73
      %p75 = scmp.ne.s32.totalorder %s63, %s64
      %p76 = scmp.eq.s32.totalorder %s19, 3
      %p77 = por %p75, %p76
      %p79 = scmp.ne.s32.totalorder %s64, %s78
      %p80 = scmp.eq.s32.totalorder %s19, 0
      %p81 = por %p79, %p80
      %s83 = sadd.s32 %s82, 1
      %p86 = scmp.eq.s32.totalorder %s13, 3
      %p87 = scmp.ne.s32.totalorder %s82, %s84
      %p88 = scmp.eq.s32.totalorder %s13, 0
      %p89 = por %p87, %p88
      %p90 = scmp.ne.s32.totalorder %s82, %s84
      %p91 = scmp.eq.s32.totalorder %s18, 3
      %p92 = por %p90, %p91
      %p93 = scmp.ne.s32.totalorder %s84, %s85
      %p94 = scmp.eq.s32.totalorder %s18, 0
      %p95 = por %p93, %p94
      %p96 = scmp.ne.s32.totalorder %s84, %s85
      %p97 = scmp.eq.s32.totalorder %s19, 3
      %p98 = por %p96, %p97
      %p100 = scmp.ne.s32.totalorder %s85, %s99
      %p101 = scmp.eq.s32.totalorder %s19, 0
      %p102 = por %p100, %p101
      %s104 = sadd.s32 %s103, 1
      %p107 = scmp.eq.s32.totalorder %s13, 3
      %p108 = scmp.ne.s32.totalorder %s103, %s105
      %p109 = scmp.eq.s32.totalorder %s13, 0
      %p110 = por %p108, %p109
      %p111 = scmp.ne.s32.totalorder %s103, %s105
      %p112 = scmp.eq.s32.totalorder %s18, 3
      %p113 = por %p111, %p112
      %p114 = scmp.ne.s32.totalorder %s105, %s106
      %p115 = scmp.eq.s32.totalorder %s18, 0
      %p116 = por %p114, %p115
      %p117 = scmp.ne.s32.totalorder %s105, %s106
      %p118 = scmp.eq.s32.totalorder %s19, 3
      %p119 = por %p117, %p118
      %p121 = scmp.ne.s32.totalorder %s106, %s120
      %p122 = scmp.eq.s32.totalorder %s19, 0
      %p123 = por %p121, %p122
      %s124 = ssub.s32 %s20, %s32
      %s125 = ssub.s32 %s21, %s28
      %s126 = sor.u32 %s124, %s125
      %p127 = scmp.eq.s32.totalorder %s126, 0
      %s129 = sadd.s32 %s128, 1
      %s130 = scalar_select %p127, %s128, %s129
      %p133 = pneg %p127
      %p134 = scmp.eq.s32.totalorder %s13, 3
      %p135 = por %p133, %p134
      %p136 = scmp.ne.s32.totalorder %s128, %s131
      %p137 = scmp.eq.s32.totalorder %s13, 0
      %p138 = por %p136, %p137
      %p139 = scmp.ne.s32.totalorder %s128, %s131
      %p140 = scmp.eq.s32.totalorder %s18, 3
      %p141 = por %p139, %p140
      %p142 = scmp.ne.s32.totalorder %s131, %s132
      %p143 = scmp.eq.s32.totalorder %s18, 0
      %p144 = por %p142, %p143
      %p145 = scmp.ne.s32.totalorder %s131, %s132
      %p146 = scmp.eq.s32.totalorder %s19, 3
      %p147 = por %p145, %p146
      %p149 = scmp.ne.s32.totalorder %s132, %s148
      %p150 = scmp.eq.s32.totalorder %s19, 0
      %p151 = por %p149, %p150
      %p152 = scmp.le.s32.totalorder 1, %s13
      %p153 = scmp.lt.s32.totalorder %s13, 5
      %p154 = pnand %p152, %p153
      %p155 = pneg %p154
      // Predicated region
      $region9: #{tpu_custom_call.1} parent=5 // pred_check
        _
      $region10: #{tpu_custom_call.1} parent=5 // pred_check_branch
        %157 = sbr.rel (%p154) target = $region12
      $region11: #{tpu_custom_call.1} parent=5 // pred_region
        %s158 = ssub.s32 %s13, 1
        // Predicated region
        $region13: #{tpu_custom_call.1} parent=11 // pred_check
          %p159 = pneg %p74
        $region14: #{tpu_custom_call.1} parent=11 // pred_check_branch
          %161 = sbr.rel (%p159) target = $region16
        $region15: #{tpu_custom_call.1} parent=11 // pred_region
          _
        $region16: #{tpu_custom_call.1} parent=11 // pred_fallthru
          _
        // Predicated region
        $region17: #{tpu_custom_call.1} parent=11 // pred_check
          %p162 = pneg %p95
        $region18: #{tpu_custom_call.1} parent=11 // pred_check_branch
          %164 = sbr.rel (%p162) target = $region20
        $region19: #{tpu_custom_call.1} parent=11 // pred_region
          _
        $region20: #{tpu_custom_call.1} parent=11 // pred_fallthru
          _
        // Predicated region
        $region21: #{tpu_custom_call.1} parent=11 // pred_check
          %p165 = pneg %p116
        $region22: #{tpu_custom_call.1} parent=11 // pred_check_branch
          %167 = sbr.rel (%p165) target = $region24
        $region23: #{tpu_custom_call.1} parent=11 // pred_region
          _
        $region24: #{tpu_custom_call.1} parent=11 // pred_fallthru
          _
      $region12: #{tpu_custom_call.1} parent=5 // pred_fallthru
        _
      %p168 = scmp.lt.s32.totalorder %s13, 4
      // Predicated region
      $region25: #{tpu_custom_call.1} parent=5 // pred_check
        %p169 = pneg %p168
      $region26: #{tpu_custom_call.1} parent=5 // pred_check_branch
        %171 = sbr.rel (%p169) target = $region28
      $region27: #{tpu_custom_call.1} parent=5 // pred_region
        // Predicated region
        $region29: #{tpu_custom_call.1} parent=27 // pred_check
          %p172 = pneg %p47
        $region30: #{tpu_custom_call.1} parent=27 // pred_check_branch
          %174 = sbr.rel (%p172) target = $region32
        $region31: #{tpu_custom_call.1} parent=27 // pred_region
          %p175 = scmp.lt.s32.totalorder %s20, 1
          %s176 = scalar_select %p175, %s20, 1
          %p177 = scmp.lt.s32.totalorder %s21, 1
          %s178 = scalar_select %p177, %s21, 1
          %s179 = smul.addr %s178, 2
          %s180 = smul.addr %s176, 4
          %s181 = sadd.s32 %s179, %s180
          %s182 = smul.addr %s181, 4
          %s183 = scalar_lea.vmem %s0, %s182
        $region32: #{tpu_custom_call.1} parent=27 // pred_fallthru
          _
      $region28: #{tpu_custom_call.1} parent=5 // pred_fallthru
        _
      %p184 = scmp.le.s32.totalorder 1, %s13
      %p185 = scmp.lt.s32.totalorder %s13, 5
      %p186 = pnand %p184, %p185
      %p187 = pneg %p186
      // Predicated region
      $region33: #{tpu_custom_call.1} parent=5 // pred_check
        _
      $region34: #{tpu_custom_call.1} parent=5 // pred_check_branch
        %189 = sbr.rel (%p186) target = $region36
      $region35: #{tpu_custom_call.1} parent=5 // pred_region
        %s190 = ssub.s32 %s13, 1
        %p191 = scmp.lt.s32.totalorder %s22, 1
        %s192 = scalar_select %p191, %s22, 1
        %p193 = scmp.lt.s32.totalorder %s23, 1
        %s194 = scalar_select %p193, %s23, 1
        %s195 = smul.addr %s194, 2
        %s196 = smul.addr %s192, 4
        %s197 = sadd.s32 %s195, %s196
        %s198 = smul.addr %s197, 4
        %s199 = scalar_lea.vmem %s0, %s198
        %p200 = pneg %p53
        %p201 = pneg %p50
        %p202 = pneg %p74
        %p203 = pneg %p71
        %p204 = pneg %p95
        %p205 = pneg %p92
        %p206 = pneg %p116
        %p207 = pneg %p113
        %p208 = pneg %p144
        %p209 = pneg %p141
        %s210 = sand.u32 %s131, 1
        %s211 = scalar_lea.sflag [#allocation4], %s210
        %s212 = sand.u32 %s131, 1
        %s213 = smul.addr %s212, 128
        %s214 = scalar_lea.vmem [#allocation3], %s213
        %p215 = scmp.lt.s32.totalorder %s22, 1
        %s216 = scalar_select %p215, %s22, 1
        %p217 = scmp.lt.s32.totalorder %s23, 1
        %s218 = scalar_select %p217, %s23, 1
        %s219 = smul.addr %s218, 2
        %s220 = smul.addr %s216, 4
        %s221 = sadd.s32 %s219, %s220
        %s222 = smul.addr %s221, 4
        %s223 = scalar_lea.vmem %s0, %s222
        %v224 = vld [vmem:[%s223] sm:$0xf]
        %v225 = vld [vmem:[%s3] sm:$0x1]
        %v226 = vperm.slane %v225, 0
        %v227 = vmul.f32 %v224, %v226
        %228 = vst [vmem:[#allocation2] sm:$0xf] %v227
        %v229 = vld [vmem:[%s223] sm:$0xff]
        %231 = vst [vmem:[#allocation1] ss:$2 sm:$0xff] %v229
        %v232 = vld.sshfl [vmem:[#allocation1] sm:$0xff pattern:$0x75316420]
        %v233 = vld.sshfl [vmem:[#allocation1 + $0x8] sm:$0xff pattern:$0x75316420]
        %234 = vrot.lane.b32.xlu0 %v232, 127
        %v235 = vpop.permute.xlu0 %234
        %236 = vrot.lane.b32.xlu0 %v233, 127
        %v237 = vpop.permute.xlu0 %236
        %vm238 = vcmask 1039360
        %v239 = vsel %vm238, %v235, %v237
        %241 = vst [vmem:[#allocation2 + $0x4] sm:$0xf] %v239
        %v242 = vld [vmem:[%s223] sm:$0xff]
        %v243 = vld [vmem:[%s3 + $0x2] sm:$0x1]
        %v244 = vperm.slane %v243, 0
        %246 = vrot.lane.b32.xlu0 %v244, 2
        %v247 = vpop.permute.xlu0 %246
        %v248 = vrot.slane %v247, 4
        %vm249 = vcmask 15360
        %v250 = vsel %vm249, %v248, %v247
        %v252 = vmul.f32 %v242, %v250
        %254 = vst [vmem:[#allocation1] ss:$2 sm:$0xff] %v252
        %v255 = vld.sshfl [vmem:[#allocation1] sm:$0xff pattern:$0x75316420]
        %v256 = vld.sshfl [vmem:[#allocation1 + $0x8] sm:$0xff pattern:$0x75316420]
        %257 = vrot.lane.b32.xlu0 %v255, 126
        %v258 = vpop.permute.xlu0 %257
        %259 = vrot.lane.b32.xlu0 %v256, 126
        %v260 = vpop.permute.xlu0 %259
        %vm261 = vcmask 1031168
        %v262 = vsel %vm261, %v258, %v260
        %264 = vst [vmem:[#allocation2 + $0x8] sm:$0xf] %v262
        %v265 = vld [vmem:[%s223] sm:$0xff]
        %v266 = vld [vmem:[%s3] sm:$0x1]
        %v267 = vperm.slane %v266, 0
        %269 = vrot.lane.b32.xlu0 %v267, 16
        %v270 = vpop.permute.xlu0 %269
        %v271 = vrot.slane %v270, 4
        %vm272 = vcmask 130048
        %v273 = vsel %vm272, %v271, %v270
        %v275 = vmul.f32 %v265, %v273
        %277 = vst [vmem:[#allocation1] ss:$2 sm:$0xff] %v275
        %v278 = vld.sshfl [vmem:[#allocation1] sm:$0xff pattern:$0x75316420]
        %v279 = vld.sshfl [vmem:[#allocation1 + $0x8] sm:$0xff pattern:$0x75316420]
        %280 = vrot.lane.b32.xlu0 %v278, 112
        %v281 = vpop.permute.xlu0 %280
        %282 = vrot.lane.b32.xlu0 %v279, 112
        %v283 = vpop.permute.xlu0 %282
        %vm284 = vcmask 916480
        %v285 = vsel %vm284, %v281, %v283
        %287 = vst [vmem:[#allocation2 + $0xc] sm:$0xf] %v285
        %v288 = vld [vmem:[%s223] sm:$0xff]
        %290 = vst [vmem:[#allocation1] ss:$2 sm:$0xff] %v288
        %v291 = vld.sshfl [vmem:[#allocation1] sm:$0xff pattern:$0x75316420]
        %v292 = vld.sshfl [vmem:[#allocation1 + $0x8] sm:$0xff pattern:$0x75316420]
        %293 = vrot.lane.b32.xlu0 %v291, 111
        %v294 = vpop.permute.xlu0 %293
        %295 = vrot.lane.b32.xlu0 %v292, 111
        %v296 = vpop.permute.xlu0 %295
        %vm297 = vcmask 908288
        %v298 = vsel %vm297, %v294, %v296
        %300 = vst [vmem:[#allocation2 + $0x10] sm:$0xf] %v298
        %v301 = vld [vmem:[%s223] sm:$0xff]
        %v302 = vld [vmem:[%s3 + $0x2] sm:$0x1]
        %v303 = vperm.slane %v302, 0
        %305 = vrot.lane.b32.xlu0 %v303, 18
        %v306 = vpop.permute.xlu0 %305
        %v307 = vrot.slane %v306, 4
        %vm308 = vcmask 146432
        %v309 = vsel %vm308, %v307, %v306
        %v311 = vmul.f32 %v301, %v309
        %313 = vst [vmem:[#allocation1] ss:$2 sm:$0xff] %v311
        %v314 = vld.sshfl [vmem:[#allocation1] sm:$0xff pattern:$0x75316420]
        %v315 = vld.sshfl [vmem:[#allocation1 + $0x8] sm:$0xff pattern:$0x75316420]
        %316 = vrot.lane.b32.xlu0 %v314, 110
        %v317 = vpop.permute.xlu0 %316
        %318 = vrot.lane.b32.xlu0 %v315, 110
        %v319 = vpop.permute.xlu0 %318
        %vm320 = vcmask 900096
        %v321 = vsel %vm320, %v317, %v319
        %323 = vst [vmem:[#allocation2 + $0x14] sm:$0xf] %v321
        %v324 = vld [vmem:[%s223] sm:$0xff]
        %v325 = vld [vmem:[%s3] sm:$0x1]
        %v326 = vperm.slane %v325, 0
        %328 = vrot.lane.b32.xlu0 %v326, 32
        %v329 = vpop.permute.xlu0 %328
        %v330 = vrot.slane %v329, 4
        %vm331 = vcmask 261120
        %v332 = vsel %vm331, %v330, %v329
        %v334 = vmul.f32 %v324, %v332
        %336 = vst [vmem:[#allocation1] ss:$2 sm:$0xff] %v334
        %v337 = vld.sshfl [vmem:[#allocation1] sm:$0xff pattern:$0x75316420]
        %v338 = vld.sshfl [vmem:[#allocation1 + $0x8] sm:$0xff pattern:$0x75316420]
        %339 = vrot.lane.b32.xlu0 %v337, 96
        %v340 = vpop.permute.xlu0 %339
        %341 = vrot.lane.b32.xlu0 %v338, 96
        %v342 = vpop.permute.xlu0 %341
        %vm343 = vcmask 785408
        %v344 = vsel %vm343, %v340, %v342
        %346 = vst [vmem:[#allocation2 + $0x18] sm:$0xf] %v344
        %v347 = vld [vmem:[%s223] sm:$0xff]
        %349 = vst [vmem:[#allocation1] ss:$2 sm:$0xff] %v347
        %v350 = vld.sshfl [vmem:[#allocation1] sm:$0xff pattern:$0x75316420]
        %v351 = vld.sshfl [vmem:[#allocation1 + $0x8] sm:$0xff pattern:$0x75316420]
        %352 = vrot.lane.b32.xlu0 %v350, 95
        %v353 = vpop.permute.xlu0 %352
        %354 = vrot.lane.b32.xlu0 %v351, 95
        %v355 = vpop.permute.xlu0 %354
        %vm356 = vcmask 777216
        %v357 = vsel %vm356, %v353, %v355
        %359 = vst [vmem:[#allocation2 + $0x1c] sm:$0xf] %v357
        %v360 = vld [vmem:[%s223] sm:$0xff]
        %v361 = vld [vmem:[%s3 + $0x2] sm:$0x1]
        %v362 = vperm.slane %v361, 0
        %364 = vrot.lane.b32.xlu0 %v362, 34
        %v365 = vpop.permute.xlu0 %364
        %v366 = vrot.slane %v365, 4
        %vm367 = vcmask 277504
        %v368 = vsel %vm367, %v366, %v365
        %v370 = vmul.f32 %v360, %v368
        %372 = vst [vmem:[#allocation1] ss:$2 sm:$0xff] %v370
        %v373 = vld.sshfl [vmem:[#allocation1] sm:$0xff pattern:$0x75316420]
        %v374 = vld.sshfl [vmem:[#allocation1 + $0x8] sm:$0xff pattern:$0x75316420]
        %375 = vrot.lane.b32.xlu0 %v373, 94
        %v376 = vpop.permute.xlu0 %375
        %377 = vrot.lane.b32.xlu0 %v374, 94
        %v378 = vpop.permute.xlu0 %377
        %vm379 = vcmask 769024
        %v380 = vsel %vm379, %v376, %v378
        %382 = vst [vmem:[#allocation2 + $0x20] sm:$0xf] %v380
        %v383 = vld [vmem:[%s1] sm:$0xff]
        %v384 = vld [vmem:[%s1 + $0x8] sm:$0xff]
        %v385 = vld [vmem:[%s1 + $0x10] sm:$0xff]
        %v386 = vld [vmem:[%s1 + $0x18] sm:$0xff]
        %v387 = vld [vmem:[%s1 + $0x20] sm:$0xff]
        %v388 = vld [vmem:[%s1 + $0x28] sm:$0xff]
        %v389 = vld [vmem:[%s1 + $0x30] sm:$0xff]
        %v390 = vld [vmem:[%s1 + $0x38] sm:$0xff]
        %v391 = vld [vmem:[%s1 + $0x40] sm:$0xff]
        %v392 = vld [vmem:[%s1 + $0x48] sm:$0xff]
        %v393 = vld [vmem:[%s1 + $0x50] sm:$0xff]
        %v394 = vld [vmem:[%s1 + $0x58] sm:$0xff]
        %v395 = vld [vmem:[%s1 + $0x60] sm:$0xff]
        %v396 = vld [vmem:[%s1 + $0x68] sm:$0xff]
        %v397 = vld [vmem:[%s1 + $0x70] sm:$0xff]
        %v398 = vld [vmem:[%s1 + $0x78] sm:$0xff]
        %v399 = vmax.f32 %v383, 0.0
        %v400 = vmax.f32 %v384, 0.0
        %v401 = vmax.f32 %v385, 0.0
        %v402 = vmax.f32 %v386, 0.0
        %v403 = vmax.f32 %v387, 0.0
        %v404 = vmax.f32 %v388, 0.0
        %v405 = vmax.f32 %v389, 0.0
        %v406 = vmax.f32 %v390, 0.0
        %v407 = vmax.f32 %v391, 0.0
        %v408 = vmax.f32 %v392, 0.0
        %v409 = vmax.f32 %v393, 0.0
        %v410 = vmax.f32 %v394, 0.0
        %v411 = vmax.f32 %v395, 0.0
        %v412 = vmax.f32 %v396, 0.0
        %v413 = vmax.f32 %v397, 0.0
        %v414 = vmax.f32 %v398, 0.0
        %v415 = vld [vmem:[#allocation2] sm:$0xff]
        %v416 = vld [vmem:[#allocation2 + $0x8] sm:$0xff]
        %v417 = vld [vmem:[#allocation2 + $0x10] sm:$0xff]
        %v418 = vld [vmem:[#allocation2 + $0x18] sm:$0xff]
        %v419 = vld [vmem:[#allocation2 + $0x20] sm:$0xf]
        %v420 = vld [vmem:[%s2] sm:$0xff]
        %v421 = vld [vmem:[%s2 + $0x8] sm:$0xff]
        %v422 = vld [vmem:[%s2 + $0x10] sm:$0xff]
        %v423 = vld [vmem:[%s2 + $0x18] sm:$0xff]
        %v424 = vld [vmem:[%s2 + $0x20] sm:$0xff]
        %v425 = vld [vmem:[%s2 + $0x28] sm:$0xff]
        %v426 = vld [vmem:[%s2 + $0x30] sm:$0xff]
        %v427 = vld [vmem:[%s2 + $0x38] sm:$0xff]
        %v428 = vld [vmem:[%s2 + $0x40] sm:$0xff]
        %v429 = vld [vmem:[%s2 + $0x48] sm:$0xff]
        %v430 = vld [vmem:[%s2 + $0x50] sm:$0xff]
        %v431 = vld [vmem:[%s2 + $0x58] sm:$0xff]
        %v432 = vld [vmem:[%s2 + $0x60] sm:$0xff]
        %v433 = vld [vmem:[%s2 + $0x68] sm:$0xff]
        %v434 = vld [vmem:[%s2 + $0x70] sm:$0xff]
        %v435 = vld [vmem:[%s2 + $0x78] sm:$0xff]
        %437 = vset.pattern.permute.xlu0 0
        %438 = vperm.xlu0 %437, %v420
        %v439 = vpop.permute.xlu0 %438
        %442 = vset.pattern.permute.xlu0 0
        %443 = vperm.xlu0 %442, %v421
        %v444 = vpop.permute.xlu0 %443
        %447 = vset.pattern.permute.xlu0 0
        %448 = vperm.xlu0 %447, %v422
        %v449 = vpop.permute.xlu0 %448
        %452 = vset.pattern.permute.xlu0 0
        %453 = vperm.xlu0 %452, %v423
        %v454 = vpop.permute.xlu0 %453
        %457 = vset.pattern.permute.xlu0 0
        %458 = vperm.xlu0 %457, %v424
        %v459 = vpop.permute.xlu0 %458
        %462 = vset.pattern.permute.xlu0 0
        %463 = vperm.xlu0 %462, %v425
        %v464 = vpop.permute.xlu0 %463
        %467 = vset.pattern.permute.xlu0 0
        %468 = vperm.xlu0 %467, %v426
        %v469 = vpop.permute.xlu0 %468
        %472 = vset.pattern.permute.xlu0 0
        %473 = vperm.xlu0 %472, %v427
        %v474 = vpop.permute.xlu0 %473
        %477 = vset.pattern.permute.xlu0 0
        %478 = vperm.xlu0 %477, %v428
        %v479 = vpop.permute.xlu0 %478
        %482 = vset.pattern.permute.xlu0 0
        %483 = vperm.xlu0 %482, %v429
        %v484 = vpop.permute.xlu0 %483
        %487 = vset.pattern.permute.xlu0 0
        %488 = vperm.xlu0 %487, %v430
        %v489 = vpop.permute.xlu0 %488
        %492 = vset.pattern.permute.xlu0 0
        %493 = vperm.xlu0 %492, %v431
        %v494 = vpop.permute.xlu0 %493
        %497 = vset.pattern.permute.xlu0 0
        %498 = vperm.xlu0 %497, %v432
        %v499 = vpop.permute.xlu0 %498
        %502 = vset.pattern.permute.xlu0 0
        %503 = vperm.xlu0 %502, %v433
        %v504 = vpop.permute.xlu0 %503
        %507 = vset.pattern.permute.xlu0 0
        %508 = vperm.xlu0 %507, %v434
        %v509 = vpop.permute.xlu0 %508
        %512 = vset.pattern.permute.xlu0 0
        %513 = vperm.xlu0 %512, %v435
        %v514 = vpop.permute.xlu0 %513
        %vm516 = vcmask 293888
        %v518 = vsel %vm516, %v399, 0
        %v521 = vsel %vm516, %v400, 0
        %v524 = vsel %vm516, %v401, 0
        %v527 = vsel %vm516, %v402, 0
        %v530 = vsel %vm516, %v403, 0
        %v533 = vsel %vm516, %v404, 0
        %v536 = vsel %vm516, %v405, 0
        %v539 = vsel %vm516, %v406, 0
        %v542 = vsel %vm516, %v407, 0
        %v545 = vsel %vm516, %v408, 0
        %v548 = vsel %vm516, %v409, 0
        %v551 = vsel %vm516, %v410, 0
        %v554 = vsel %vm516, %v411, 0
        %v557 = vsel %vm516, %v412, 0
        %v560 = vsel %vm516, %v413, 0
        %v563 = vsel %vm516, %v414, 0
        %vm565 = vcmask 1043456
        %v567 = vsel %vm565, %v419, 0
        %569 = vmatpush.msra.mxu0 0.0
        %570 = vmatpush.msra.mxu0 0.0
        %571 = vmatpush.msra.mxu0 0.0
        %572 = vmatpush.msra.mxu0 0.0
        %573 = vmatpush.msra.mxu0 0.0
        %574 = vmatpush.msra.mxu0 0.0
        %575 = vmatpush.msra.mxu0 0.0
        %576 = vmatpush.msra.mxu0 0.0
        %577 = vmatpush.msra.mxu0 0.0
        %578 = vmatpush.msra.mxu0 0.0
        %579 = vmatpush.msra.mxu0 0.0
        %580 = vmatpush.msra.mxu0 %v567
        %581 = vmatpush.msra.mxu0 %v418
        %582 = vmatpush.msra.mxu0 %v417
        %583 = vmatpush.msra.mxu0 %v416
        %584 = vmatpush.msra.mxu0 %v415
        %585 = vmatmul.f32.gmra.mxu0 %v518
        %v586 = vpop.f32.mrf.mxu0
        %v587 = vadd.f32 %v439, %v586
        %588 = vmatmul.f32.gmra.mxu0 %v521
        %v589 = vpop.f32.mrf.mxu0
        %v590 = vadd.f32 %v444, %v589
        %591 = vmatmul.f32.gmra.mxu0 %v524
        %v592 = vpop.f32.mrf.mxu0
        %v593 = vadd.f32 %v449, %v592
        %594 = vmatmul.f32.gmra.mxu0 %v527
        %v595 = vpop.f32.mrf.mxu0
        %v596 = vadd.f32 %v454, %v595
        %597 = vmatmul.f32.gmra.mxu0 %v530
        %v598 = vpop.f32.mrf.mxu0
        %v599 = vadd.f32 %v459, %v598
        %600 = vmatmul.f32.gmra.mxu0 %v533
        %v601 = vpop.f32.mrf.mxu0
        %v602 = vadd.f32 %v464, %v601
        %603 = vmatmul.f32.gmra.mxu0 %v536
        %v604 = vpop.f32.mrf.mxu0
        %v605 = vadd.f32 %v469, %v604
        %606 = vmatmul.f32.gmra.mxu0 %v539
        %v607 = vpop.f32.mrf.mxu0
        %v608 = vadd.f32 %v474, %v607
        %609 = vmatmul.f32.gmra.mxu0 %v542
        %v610 = vpop.f32.mrf.mxu0
        %v611 = vadd.f32 %v479, %v610
        %612 = vmatmul.f32.gmra.mxu0 %v545
        %v613 = vpop.f32.mrf.mxu0
        %v614 = vadd.f32 %v484, %v613
        %615 = vmatmul.f32.gmra.mxu0 %v548
        %v616 = vpop.f32.mrf.mxu0
        %v617 = vadd.f32 %v489, %v616
        %618 = vmatmul.f32.gmra.mxu0 %v551
        %v619 = vpop.f32.mrf.mxu0
        %v620 = vadd.f32 %v494, %v619
        %621 = vmatmul.f32.gmra.mxu0 %v554
        %v622 = vpop.f32.mrf.mxu0
        %v623 = vadd.f32 %v499, %v622
        %624 = vmatmul.f32.gmra.mxu0 %v557
        %v625 = vpop.f32.mrf.mxu0
        %v626 = vadd.f32 %v504, %v625
        %627 = vmatmul.f32.gmra.mxu0 %v560
        %v628 = vpop.f32.mrf.mxu0
        %v629 = vadd.f32 %v509, %v628
        %630 = vmatmul.f32.gmra.mxu0 %v563
        %v631 = vpop.f32.mrf.mxu0
        %v632 = vadd.f32 %v514, %v631
        %633 = vdwg.mxu0
        %v634 = vmax.f32 %v587, 0.0
        %v635 = vmax.f32 %v590, 0.0
        %v636 = vmax.f32 %v593, 0.0
        %v637 = vmax.f32 %v596, 0.0
        %v638 = vmax.f32 %v599, 0.0
        %v639 = vmax.f32 %v602, 0.0
        %v640 = vmax.f32 %v605, 0.0
        %v641 = vmax.f32 %v608, 0.0
        %v642 = vmax.f32 %v611, 0.0
        %v643 = vmax.f32 %v614, 0.0
        %v644 = vmax.f32 %v617, 0.0
        %v645 = vmax.f32 %v620, 0.0
        %v646 = vmax.f32 %v623, 0.0
        %v647 = vmax.f32 %v626, 0.0
        %v648 = vmax.f32 %v629, 0.0
        %v649 = vmax.f32 %v632, 0.0
        %650 = vst [vmem:[%s214] sm:$0xff] %v634
        %651 = vst [vmem:[%s214 + $0x8] sm:$0xff] %v635
        %652 = vst [vmem:[%s214 + $0x10] sm:$0xff] %v636
        %653 = vst [vmem:[%s214 + $0x18] sm:$0xff] %v637
        %654 = vst [vmem:[%s214 + $0x20] sm:$0xff] %v638
        %655 = vst [vmem:[%s214 + $0x28] sm:$0xff] %v639
        %656 = vst [vmem:[%s214 + $0x30] sm:$0xff] %v640
        %657 = vst [vmem:[%s214 + $0x38] sm:$0xff] %v641
        %658 = vst [vmem:[%s214 + $0x40] sm:$0xff] %v642
        %659 = vst [vmem:[%s214 + $0x48] sm:$0xff] %v643
        %660 = vst [vmem:[%s214 + $0x50] sm:$0xff] %v644
        %661 = vst [vmem:[%s214 + $0x58] sm:$0xff] %v645
        %662 = vst [vmem:[%s214 + $0x60] sm:$0xff] %v646
        %663 = vst [vmem:[%s214 + $0x68] sm:$0xff] %v647
        %664 = vst [vmem:[%s214 + $0x70] sm:$0xff] %v648
        %665 = vst [vmem:[%s214 + $0x78] sm:$0xff] %v649
        %s666 = sand.u32 %s131, 1
        %s667 = scalar_lea.sflag [#allocation4], %s666
        %s668 = sand.u32 %s131, 1
        %s669 = smul.addr %s668, 128
        %s670 = scalar_lea.vmem [#allocation3], %s669
        // Predicated region
        $region37: #{tpu_custom_call.1} parent=35 // pred_check
          %p671 = pneg %p141
        $region38: #{tpu_custom_call.1} parent=35 // pred_check_branch
          %673 = sbr.rel (%p671) target = $region40
        $region39: #{tpu_custom_call.1} parent=35 // pred_region
          %675 = vsyncadd %s667, 0
          %s676 = smul.addr %s22, 32
          %s677 = sadd.s32 %s23, %s676
          %s678 = smul.addr %s677, 8
          %s679 = scalar_lea.hbm %s4, %s678
          %s680 = sshll.u32 %s670, 4
          %s681 = int_to_ptr.vmem [resolvable:$true] %s680
          %s682 = sshll.u32 %s679, 4
          %s683 = int_to_ptr.hbm [resolvable:$true] %s682
          %688 = dma.vmem_to_hbm [thread:$0]  %s681, 2048, %s683, %s667, 128, 256, 8
        $region40: #{tpu_custom_call.1} parent=35 // pred_fallthru
          _
      $region36: #{tpu_custom_call.1} parent=5 // pred_fallthru
        _
      %p689 = scmp.le.s32.totalorder 2, %s13
      // Predicated region
      $region41: #{tpu_custom_call.1} parent=5 // pred_check
        %p690 = pneg %p689
      $region42: #{tpu_custom_call.1} parent=5 // pred_check_branch
        %692 = sbr.rel (%p690) target = $region44
      $region43: #{tpu_custom_call.1} parent=5 // pred_region
        %s693 = ssub.s32 %s13, 2
        // Predicated region
        $region45: #{tpu_custom_call.1} parent=43 // pred_check
          %p694 = pneg %p147
        $region46: #{tpu_custom_call.1} parent=43 // pred_check_branch
          %696 = sbr.rel (%p694) target = $region48
        $region47: #{tpu_custom_call.1} parent=43 // pred_region
          %s697 = sand.u32 %s132, 1
          %s698 = scalar_lea.sflag [#allocation4], %s697
          %s699 = sand.u32 %s132, 1
          %s700 = smul.addr %s699, 128
          %s701 = scalar_lea.vmem [#allocation3], %s700
          %703 = dma.done %s698, 2048
        $region48: #{tpu_custom_call.1} parent=43 // pred_fallthru
          _
      $region44: #{tpu_custom_call.1} parent=5 // pred_fallthru
        _
    $region6: #{tpu_custom_call.1} parent=1 // loop_footer
      %s17 = sadd.s32 1, %s13
    $region7: #{tpu_custom_call.1} parent=1 // loop_footer_branch
      %12 = sbr.rel target = $region3
    $region8: #{tpu_custom_call.1} parent=1 // loop_exit
      _
    %704 = vsyncpa [#allocation4], 1
    %s705 = scalar_lea.sflag [#allocation4], 1
    %706 = vsyncpa %s705, 1

</llo_original>
